<compile_context>
chip_gen: v7x
topology: tpu7x:2x2x1
jax: 0.10.0
libtpu: 0.0.40
codegen_flags: <defaults>
</compile_context>

<pallas_src>
import jax
import jax.numpy as jnp
from jax.experimental import pallas as pl
from jax.experimental.pallas import tpu as pltpu


def _dlgd_kernel(r_ref, x_ref, phi_ref, y_ref, o_ref):
    # r_ref   : (1,)        SMEM   learnable step size r (f32)
    # x_ref   : (1, C, TS)  VMEM   xk_1 tile (spatial flattened, lane-dense)
    # phi_ref : (1, C, TS)  VMEM   sensing-mask tile
    # y_ref   : (1, 1, TS)  VMEM   measurement tile
    # o_ref   : (1, C, TS)  VMEM   vk tile
    r = r_ref[0].astype(jnp.float32)
    x = x_ref[0].astype(jnp.float32)          # (C, TS)
    phi = phi_ref[0].astype(jnp.float32)      # (C, TS)
    y = y_ref[0].astype(jnp.float32)          # (1, TS)

    # func_A(x, Phi): masked spectral sum -> (1, TS), accumulated in f32.
    phi_x = jnp.sum(x * phi, axis=0, keepdims=True)
    # Scale the (1, TS) residual by r BEFORE broadcasting over channels:
    # vk = x - Phi * (r * (phi_x - y))   (saves a full (C, TS) multiply).
    yd_r = r * (phi_x - y)
    o_ref[0] = (x - phi * yd_r).astype(o_ref.dtype)


def _pick_spatial_tile(s_pad, c, batch, in_itemsize, out_itemsize,
                       *, max_tile=24576, vmem_budget=24 << 20, min_steps=8):
    """Largest multiple-of-128 spatial tile that

      * is capped at `max_tile` lanes,
      * keeps the double-buffered working set (x + Phi + y + out blocks) plus the
        f32 compute intermediates under `vmem_budget` (sized for v7x's 64 MiB VMEM),
      * leaves at least `min_steps` total grid steps when possible, so the DMA
        pipeline stays deep and megacore / v7x 2-TC sharding has work to split.
    """
    # bytes of pipelined VMEM per lane of tile:
    #   2 buffers x (x + Phi + y input blocks + out block) + ~2 f32 intermediates
    per_lane = 2 * ((2 * c + 1) * in_itemsize + c * out_itemsize) + 2 * c * 4
    ts = min(max_tile, s_pad, max(128, vmem_budget // per_lane))
    ts = max(128, (ts // 128) * 128)
    while batch * (-(-s_pad // ts)) < min_steps and ts > 128:
        ts = max(128, ((ts // 2) // 128) * 128)
    return ts, per_lane


def dlgd(y, xk_1, appendix, r):
    """One DLGD gradient step.

    y        : (B, 1, H, W) or (B, H, W)   measurement
    xk_1     : (B, C, H, W)                current estimate
    appendix : (B, C, H, W)                sensing mask Phi
    r        : scalar / (1,) array         learnable step size
    returns  : (B, C, H, W)                vk = xk_1 - r * Phi*(sum_c(Phi*xk_1) - y)
    """
    B, C, H, W = xk_1.shape
    assert appendix.shape == (B, C, H, W), appendix.shape
    S = H * W

    if y.ndim == 4:
        assert y.shape[1] == 1, "DLGD kernel assumes a single measurement frame (L=1)"
    y2 = y.reshape(B, 1, S)
    xf = xk_1.reshape(B, C, S)
    pf = appendix.reshape(B, C, S)

    # Lane-dense flattened spatial axis: pad (only if needed) to a multiple of 128 so
    # every block satisfies the (8, 128) lane constraint; the cdiv grid handles any
    # ragged last tile without falling back to one huge untiled block.
    S_pad = (-(-S // 128)) * 128
    if S_pad != S:
        pad = ((0, 0), (0, 0), (0, S_pad - S))
        xf = jnp.pad(xf, pad)
        pf = jnp.pad(pf, pad)
        y2 = jnp.pad(y2, pad)

    # r stays f32 in SMEM (avoid sub-32-bit SMEM scalars for bf16 models).
    r_arr = jnp.asarray(r, dtype=jnp.float32).reshape(1)

    in_itemsize = jnp.dtype(xk_1.dtype).itemsize
    out_itemsize = in_itemsize
    ts, per_lane = _pick_spatial_tile(S_pad, C, B, in_itemsize, out_itemsize)
    n_tiles = -(-S_pad // ts)
    grid = (B, n_tiles)

    # Scoped-VMEM limit: enough for the pipelined working set (above v5e's 16 MiB
    # scoped default), clamped below v7x's 64 MiB physical VMEM.
    vmem_limit = int(max(32 << 20, min(48 << 20, 2 * per_lane * ts)))

    # Advisory cost for XLA's scheduler (bandwidth-heavy, no transcendentals).
    flops = int(4 * B * C * S + 2 * B * S)
    bytes_accessed = int(B * S * (3 * C * in_itemsize + in_itemsize))
    cost = pl.CostEstimate(flops=flops, transcendentals=0,
                           bytes_accessed=bytes_accessed)

    out = pl.pallas_call(
        _dlgd_kernel,
        out_shape=jax.ShapeDtypeStruct((B, C, S_pad), xk_1.dtype),
        grid_spec=pltpu.PrefetchScalarGridSpec(
            num_scalar_prefetch=0,
            grid=grid,
            in_specs=[
                pl.BlockSpec(memory_space=pltpu.MemorySpace.SMEM),      # r
                pl.BlockSpec((1, C, ts), lambda b, s: (b, 0, s)),       # xk_1
                pl.BlockSpec((1, C, ts), lambda b, s: (b, 0, s)),       # Phi
                pl.BlockSpec((1, 1, ts), lambda b, s: (b, 0, s)),       # y
            ],
            out_specs=pl.BlockSpec((1, C, ts), lambda b, s: (b, 0, s)),
        ),
        compiler_params=pltpu.CompilerParams(
            dimension_semantics=("parallel", "parallel"),
            vmem_limit_bytes=vmem_limit),
        cost_estimate=cost,
    )(r_arr, xf, pf, y2)

    if S_pad != S:
        out = out[:, :, :S]
    return out.reshape(B, C, H, W)


def _reference(y, xk_1, appendix, r):
    # Pure-JAX mirror of the PyTorch DLGD forward with the canonical CASSI A / A^T.
    y = y if y.ndim == 4 else y[:, None]
    phi_x = jnp.sum(xk_1 * appendix, axis=1, keepdims=True)     # func_A
    yd = phi_x - y
    at = yd * appendix                                           # func_A_inv
    return xk_1 - jnp.asarray(r, xk_1.dtype).reshape(()) * at


if __name__ == "__main__":
    key = jax.random.PRNGKey(0)
    ky, kx, kp = jax.random.split(key, 3)

    # Small shapes consistent with the module: batch=2, 28 spectral channels,
    # spatial 16x32 (the real model uses 28 x 256 x 310).
    B, C, H, W = 2, 28, 16, 32

    y = jax.random.normal(ky, (B, 1, H, W), dtype=jnp.float32)
    xk_1 = jax.random.normal(kx, (B, C, H, W), dtype=jnp.float32)
    appendix = jax.random.uniform(kp, (B, C, H, W), dtype=jnp.float32)
    r = jnp.array([0.5], dtype=jnp.float32)   # nn.Parameter(torch.Tensor([0.5]))

    out = jax.block_until_ready(dlgd(y, xk_1, appendix, r))
    ref = jax.block_until_ready(_reference(y, xk_1, appendix, r))

    assert out.shape == (B, C, H, W), out.shape
    assert jnp.allclose(out, ref, rtol=1e-5, atol=1e-5), \
        float(jnp.max(jnp.abs(out - ref)))
    print("KERNEL_OK")
</pallas_src>

<mosaic_0001>
module attributes {stable_mosaic.version = 11 : i64} {
  func.func @_dlgd_kernel(%arg0: i32, %arg1: i32, %arg2: memref<1xf32, #tpu.memory_space<smem>>, %arg3: memref<1x28x128xf32, #tpu.memory_space<vmem>>, %arg4: memref<1x28x128xf32, #tpu.memory_space<vmem>>, %arg5: memref<1x1x128xf32, #tpu.memory_space<vmem>>, %arg6: memref<1x28x128xf32, #tpu.memory_space<vmem>>) attributes {dimension_semantics = [#tpu.dimension_semantics<parallel>, #tpu.dimension_semantics<parallel>], iteration_bounds = array<i64: 2, 4>, scalar_prefetch = 0 : i64, scratch_operands = 0 : i64, tpu.core_type = #tpu.core_type<tc>, window_params = [{transform_indices = @transform_0, window_bounds = array<i64: 1>}, {transform_indices = @transform_1, window_bounds = array<i64: 1, 28, 128>}, {transform_indices = @transform_2, window_bounds = array<i64: 1, 28, 128>}, {transform_indices = @transform_3, window_bounds = array<i64: 1, 1, 128>}, {transform_indices = @transform_4, window_bounds = array<i64: 1, 28, 128>}]} {
    %c0 = arith.constant 0 : index
    %0 = memref.load %arg2[%c0] : memref<1xf32, #tpu.memory_space<smem>>
    %c0_0 = arith.constant 0 : index
    %c0_1 = arith.constant 0 : index
    %c0_2 = arith.constant 0 : index
    %1 = vector.load %arg3[%c0_0, %c0_1, %c0_2] : memref<1x28x128xf32, #tpu.memory_space<vmem>>, vector<1x28x128xf32>
    %2 = vector.shape_cast %1 : vector<1x28x128xf32> to vector<28x128xf32>
    %c0_3 = arith.constant 0 : index
    %c0_4 = arith.constant 0 : index
    %c0_5 = arith.constant 0 : index
    %3 = vector.load %arg4[%c0_3, %c0_4, %c0_5] : memref<1x28x128xf32, #tpu.memory_space<vmem>>, vector<1x28x128xf32>
    %4 = vector.shape_cast %3 : vector<1x28x128xf32> to vector<28x128xf32>
    %c0_6 = arith.constant 0 : index
    %c0_7 = arith.constant 0 : index
    %c0_8 = arith.constant 0 : index
    %5 = vector.load %arg5[%c0_6, %c0_7, %c0_8] : memref<1x1x128xf32, #tpu.memory_space<vmem>>, vector<1x1x128xf32>
    %6 = vector.shape_cast %5 : vector<1x1x128xf32> to vector<1x128xf32>
    %7 = arith.mulf %2, %4 : vector<28x128xf32>
    %cst = arith.constant dense<0.000000e+00> : vector<128xf32>
    %8 = vector.multi_reduction <add>, %7, %cst [0] : vector<28x128xf32> to vector<128xf32>
    %9 = vector.shape_cast %8 : vector<128xf32> to vector<1x128xf32>
    %10 = arith.subf %9, %6 : vector<1x128xf32>
    %11 = vector.broadcast %0 : f32 to vector<1x128xf32>
    %12 = arith.mulf %11, %10 : vector<1x128xf32>
    %13 = vector.broadcast %12 : vector<1x128xf32> to vector<28x128xf32>
    %14 = arith.mulf %4, %13 : vector<28x128xf32>
    %15 = arith.subf %2, %14 : vector<28x128xf32>
    %c0_9 = arith.constant 0 : index
    %c0_10 = arith.constant 0 : index
    %c0_11 = arith.constant 0 : index
    %16 = vector.load %arg6[%c0_9, %c0_10, %c0_11] : memref<1x28x128xf32, #tpu.memory_space<vmem>>, vector<1x28x128xf32>
    %17 = vector.shape_cast %16 : vector<1x28x128xf32> to vector<28x128xf32>
    %18 = vector.shape_cast %15 : vector<28x128xf32> to vector<1x28x128xf32>
    tpu.vector_store %arg6[%c0_9, %c0_10, %c0_11], %18 {strides = array<i32>} : memref<1x28x128xf32, #tpu.memory_space<vmem>>, vector<1x28x128xf32>,
    return
  }
  func.func @transform_0(%arg0: i32, %arg1: i32) -> i32 {
    %c0_i32 = arith.constant 0 : i32
    %c0_i32_0 = arith.constant 0 : i32
    return %c0_i32 : i32
  }
  func.func @transform_1(%arg0: i32, %arg1: i32) -> (i32, i32, i32) {
    %c0_i32 = arith.constant 0 : i32
    %c0_i32_0 = arith.constant 0 : i32
    return %arg0, %c0_i32, %arg1 : i32, i32, i32
  }
  func.func @transform_2(%arg0: i32, %arg1: i32) -> (i32, i32, i32) {
    %c0_i32 = arith.constant 0 : i32
    %c0_i32_0 = arith.constant 0 : i32
    return %arg0, %c0_i32, %arg1 : i32, i32, i32
  }
  func.func @transform_3(%arg0: i32, %arg1: i32) -> (i32, i32, i32) {
    %c0_i32 = arith.constant 0 : i32
    %c0_i32_0 = arith.constant 0 : i32
    return %arg0, %c0_i32, %arg1 : i32, i32, i32
  }
  func.func @transform_4(%arg0: i32, %arg1: i32) -> (i32, i32, i32) {
    %c0_i32 = arith.constant 0 : i32
    %c0_i32_0 = arith.constant 0 : i32
    return %arg0, %c0_i32, %arg1 : i32, i32, i32
  }
}

</mosaic_0001>

<llo_original>
// kernel: tpu_custom_call.1
$region0: #{tpu_custom_call.1}
  #allocation0 [shape = 'u32[]', space=smem, size = 0x4, offset = 0x4, fixed_abs, tag = 'smem constant byte address 0x4 - core index']
  #allocation1 [shape = 'u32[144,128]{1,0:T(1,128)}', space=vmem, size = 0x12000, scoped, tag = 'internal scratch']
  #allocation2 [shape = 'f32[1]{0:T(128)S(6)}', space=smem, size = 0x200, scoped, tag = 'scoped memory for tpu_custom_call.1']
  %s0 = inlined_call_operand.<no memory space> [shape: f32[1], index: 0, kind: input, shape index: {}]
  %s1 = inlined_call_operand.vmem [shape: f32[2,28,512], index: 1, kind: input, shape index: {}]
  %s2 = inlined_call_operand.vmem [shape: f32[2,28,512], index: 2, kind: input, shape index: {}]
  %s3 = inlined_call_operand.vmem [shape: f32[2,1,512], index: 3, kind: input, shape index: {}]
  %s4 = inlined_call_operand.vmem [shape: f32[2,28,512], index: 4, kind: output, shape index: {}]
  %s5 = sld [smem:[#allocation0]]
  $region159: #{tpu_custom_call.1} parent=0
    _
  %s7 = ssub.s32 1, %s5
  %s8 = scalar_select 0, %s7, %s5
  %9 = sst [smem:[#allocation2]] %s0
  $region1: #{tpu_custom_call.1} parent=0
    #allocation3 [shape = 'u8[32768]{0}', space=vmem, size = 0x8000, scoped, tag = 'input window, operand 1']
    #allocation4 [shape = 'u8[32768]{0}', space=vmem, size = 0x8000, scoped, tag = 'input window, operand 2']
    #allocation5 [shape = 'u8[32768]{0}', space=vmem, size = 0x8000, scoped, tag = 'output window, operand 0']
    loop: start=0, step=1, limit=10
    $region2: #{tpu_custom_call.1} parent=1 // loop_pre_header
      _
    $region3: #{tpu_custom_call.1} parent=1 // loop_header
      %s11 = sphi 0, %s15
      %p12 = scmp.ge.s32.totalorder %s11, 10
      %s18 = sphi 0, %s30
      %s19 = sphi 0, %s26
      %s20 = sphi 0, %s18
      %s21 = sphi 0, %s19
      %s22 = sphi 0, %s20
      %s23 = sphi 0, %s21
      %s31 = sphi 0, %s31
      %s33 = sphi 0, %s31
      %s34 = sphi 0, %s33
      %s48 = sphi 0, %s34
      %s56 = sphi 0, %s58
      %s59 = sphi 0, %s56
      %s60 = sphi 0, %s59
      %s76 = sphi 0, %s60
      %s84 = sphi 0, %s86
      %s87 = sphi 0, %s84
      %s88 = sphi 0, %s87
      %s104 = sphi 0, %s88
      %s112 = sphi 0, %s114
      %s115 = sphi 0, %s112
      %s116 = sphi 0, %s115
      %s132 = sphi 0, %s116
      %s140 = sphi 0, %s142
      %s143 = sphi 0, %s140
      %s144 = sphi 0, %s143
      %s160 = sphi 0, %s144
    $region4: #{tpu_custom_call.1} parent=1 // loop_header_branch
      %14 = sbr.rel (%p12) target = $region8
    $region5: #{tpu_custom_call.1} parent=1 // loop_body
      %s16 = ssub.s32 %s11, 1
      %s17 = ssub.s32 %s11, 2
      %s24 = sadd.s32 1, %s19
      %p25 = scmp.ge.s32.totalorder %s24, 4
      %s26 = scalar_select %p25, 0, %s24
      %s27 = sadd.s32 1, %s18
      %s28 = scalar_select %p25, %s27, %s18
      %p29 = scmp.ge.s32.totalorder %s28, 2
      %s30 = scalar_select %p29, 0, %s28
      %s32 = sadd.s32 %s31, 1
      %p35 = scmp.eq.s32.totalorder %s11, 7
      %p36 = scmp.ne.s32.totalorder %s31, %s33
      %p37 = scmp.eq.s32.totalorder %s11, 0
      %p38 = por %p36, %p37
      %p39 = scmp.ne.s32.totalorder %s31, %s33
      %p40 = scmp.eq.s32.totalorder %s16, 7
      %p41 = por %p39, %p40
      %p42 = scmp.ne.s32.totalorder %s33, %s34
      %p43 = scmp.eq.s32.totalorder %s16, 0
      %p44 = por %p42, %p43
      %p45 = scmp.ne.s32.totalorder %s33, %s34
      %p46 = scmp.eq.s32.totalorder %s17, 7
      %p47 = por %p45, %p46
      %p49 = scmp.ne.s32.totalorder %s34, %s48
      %p50 = scmp.eq.s32.totalorder %s17, 0
      %p51 = por %p49, %p50
      %s52 = ssub.s32 %s18, %s30
      %s53 = ssub.s32 %s19, %s26
      %s54 = sor.u32 %s52, %s53
      %p55 = scmp.eq.s32.totalorder %s54, 0
      %s57 = sadd.s32 %s56, 1
      %s58 = scalar_select %p55, %s56, %s57
      %p61 = pneg %p55
      %p62 = scmp.eq.s32.totalorder %s11, 7
      %p63 = por %p61, %p62
      %p64 = scmp.ne.s32.totalorder %s56, %s59
      %p65 = scmp.eq.s32.totalorder %s11, 0
      %p66 = por %p64, %p65
      %p67 = scmp.ne.s32.totalorder %s56, %s59
      %p68 = scmp.eq.s32.totalorder %s16, 7
      %p69 = por %p67, %p68
      %p70 = scmp.ne.s32.totalorder %s59, %s60
      %p71 = scmp.eq.s32.totalorder %s16, 0
      %p72 = por %p70, %p71
      %p73 = scmp.ne.s32.totalorder %s59, %s60
      %p74 = scmp.eq.s32.totalorder %s17, 7
      %p75 = por %p73, %p74
      %p77 = scmp.ne.s32.totalorder %s60, %s76
      %p78 = scmp.eq.s32.totalorder %s17, 0
      %p79 = por %p77, %p78
      %s80 = ssub.s32 %s18, %s30
      %s81 = ssub.s32 %s19, %s26
      %s82 = sor.u32 %s80, %s81
      %p83 = scmp.eq.s32.totalorder %s82, 0
      %s85 = sadd.s32 %s84, 1
      %s86 = scalar_select %p83, %s84, %s85
      %p89 = pneg %p83
      %p90 = scmp.eq.s32.totalorder %s11, 7
      %p91 = por %p89, %p90
      %p92 = scmp.ne.s32.totalorder %s84, %s87
      %p93 = scmp.eq.s32.totalorder %s11, 0
      %p94 = por %p92, %p93
      %p95 = scmp.ne.s32.totalorder %s84, %s87
      %p96 = scmp.eq.s32.totalorder %s16, 7
      %p97 = por %p95, %p96
      %p98 = scmp.ne.s32.totalorder %s87, %s88
      %p99 = scmp.eq.s32.totalorder %s16, 0
      %p100 = por %p98, %p99
      %p101 = scmp.ne.s32.totalorder %s87, %s88
      %p102 = scmp.eq.s32.totalorder %s17, 7
      %p103 = por %p101, %p102
      %p105 = scmp.ne.s32.totalorder %s88, %s104
      %p106 = scmp.eq.s32.totalorder %s17, 0
      %p107 = por %p105, %p106
      %s108 = ssub.s32 %s18, %s30
      %s109 = ssub.s32 %s19, %s26
      %s110 = sor.u32 %s108, %s109
      %p111 = scmp.eq.s32.totalorder %s110, 0
      %s113 = sadd.s32 %s112, 1
      %s114 = scalar_select %p111, %s112, %s113
      %p117 = pneg %p111
      %p118 = scmp.eq.s32.totalorder %s11, 7
      %p119 = por %p117, %p118
      %p120 = scmp.ne.s32.totalorder %s112, %s115
      %p121 = scmp.eq.s32.totalorder %s11, 0
      %p122 = por %p120, %p121
      %p123 = scmp.ne.s32.totalorder %s112, %s115
      %p124 = scmp.eq.s32.totalorder %s16, 7
      %p125 = por %p123, %p124
      %p126 = scmp.ne.s32.totalorder %s115, %s116
      %p127 = scmp.eq.s32.totalorder %s16, 0
      %p128 = por %p126, %p127
      %p129 = scmp.ne.s32.totalorder %s115, %s116
      %p130 = scmp.eq.s32.totalorder %s17, 7
      %p131 = por %p129, %p130
      %p133 = scmp.ne.s32.totalorder %s116, %s132
      %p134 = scmp.eq.s32.totalorder %s17, 0
      %p135 = por %p133, %p134
      %s136 = ssub.s32 %s18, %s30
      %s137 = ssub.s32 %s19, %s26
      %s138 = sor.u32 %s136, %s137
      %p139 = scmp.eq.s32.totalorder %s138, 0
      %s141 = sadd.s32 %s140, 1
      %s142 = scalar_select %p139, %s140, %s141
      %p145 = pneg %p139
      %p146 = scmp.eq.s32.totalorder %s11, 7
      %p147 = por %p145, %p146
      %p148 = scmp.ne.s32.totalorder %s140, %s143
      %p149 = scmp.eq.s32.totalorder %s11, 0
      %p150 = por %p148, %p149
      %p151 = scmp.ne.s32.totalorder %s140, %s143
      %p152 = scmp.eq.s32.totalorder %s16, 7
      %p153 = por %p151, %p152
      %p154 = scmp.ne.s32.totalorder %s143, %s144
      %p155 = scmp.eq.s32.totalorder %s16, 0
      %p156 = por %p154, %p155
      %p157 = scmp.ne.s32.totalorder %s143, %s144
      %p158 = scmp.eq.s32.totalorder %s17, 7
      %p159 = por %p157, %p158
      %p161 = scmp.ne.s32.totalorder %s144, %s160
      %p162 = scmp.eq.s32.totalorder %s17, 0
      %p163 = por %p161, %p162
      %p164 = scmp.le.s32.totalorder 1, %s11
      %p165 = scmp.lt.s32.totalorder %s11, 9
      %p166 = pnand %p164, %p165
      %p167 = pneg %p166
      // Predicated region
      $region9: #{tpu_custom_call.1} parent=5 // pred_check
        _
      $region10: #{tpu_custom_call.1} parent=5 // pred_check_branch
        %169 = sbr.rel (%p166) target = $region12
      $region11: #{tpu_custom_call.1} parent=5 // pred_region
        %s170 = ssub.s32 %s11, 1
        // Predicated region
        $region13: #{tpu_custom_call.1} parent=11 // pred_check
          %p171 = pneg %p44
        $region14: #{tpu_custom_call.1} parent=11 // pred_check_branch
          %173 = sbr.rel (%p171) target = $region16
        $region15: #{tpu_custom_call.1} parent=11 // pred_region
          _
        $region16: #{tpu_custom_call.1} parent=11 // pred_fallthru
          _
      $region12: #{tpu_custom_call.1} parent=5 // pred_fallthru
        _
      %p174 = scmp.lt.s32.totalorder %s11, 8
      // Predicated region
      $region17: #{tpu_custom_call.1} parent=5 // pred_check
        %p175 = pneg %p174
      $region18: #{tpu_custom_call.1} parent=5 // pred_check_branch
        %177 = sbr.rel (%p175) target = $region20
      $region19: #{tpu_custom_call.1} parent=5 // pred_region
        // Predicated region
        $region21: #{tpu_custom_call.1} parent=19 // pred_check
          %p178 = pneg %p66
        $region22: #{tpu_custom_call.1} parent=19 // pred_check_branch
          %180 = sbr.rel (%p178) target = $region24
        $region23: #{tpu_custom_call.1} parent=19 // pred_region
          %s181 = sand.u32 %s56, 1
          %s182 = sand.u32 %s56, 1
          %s183 = smul.addr %s182, 32
          %s184 = scalar_lea.vmem [#allocation3], %s183
          %s185 = smul.addr %s18, 16
          %s186 = sadd.s32 %s19, %s185
          %s187 = smul.addr %s186, 8
          %s188 = scalar_lea.vmem %s1, %s187
          // Predicated region
          $region25: #{tpu_custom_call.1} parent=23 // pred_check
            _
          $region26: #{tpu_custom_call.1} parent=23 // pred_check_branch
            %190 = sbr.rel (0) target = $region28
          $region27: #{tpu_custom_call.1} parent=23 // pred_region
            // Predicated region
            $region29: #{tpu_custom_call.1} parent=27 // pred_check
              _
            $region30: #{tpu_custom_call.1} parent=27 // pred_check_branch
              %192 = sbr.rel (0) target = $region32
            $region31: #{tpu_custom_call.1} parent=27 // pred_region
              // Predicated region
              $region44: #{tpu_custom_call.1} parent=31 // pred_check
                _
              $region45: #{tpu_custom_call.1} parent=31 // pred_check_branch
                %213 = sbr.rel (0) target = $region47
              $region46: #{tpu_custom_call.1} parent=31 // pred_region
                loop: start=0, step=1, limit=1
                $region48: #{tpu_custom_call.1} parent=46 // loop_pre_header
                  _
                $region49: #{tpu_custom_call.1} parent=46 // loop_header
                  %s215 = sphi 0, %s219
                  %p216 = scmp.ge.s32.totalorder %s215, 1
                  %s220 = sphi %s188, %s188
                  %s221 = sphi %s184, %s184
                $region50: #{tpu_custom_call.1} parent=46 // loop_header_branch
                  %218 = sbr.rel (%p216) target = $region54
                $region51: #{tpu_custom_call.1} parent=46 // loop_body
                  %v222 = vld [vmem:[%s220] sm:$0xff]
                  %223 = vst [vmem:[%s221] sm:$0xff] %v222
                  %v224 = vld [vmem:[%s220 + $0x20] sm:$0xff]
                  %225 = vst [vmem:[%s221 + $0x8] sm:$0xff] %v224
                  %v226 = vld [vmem:[%s220 + $0x40] sm:$0xff]
                  %227 = vst [vmem:[%s221 + $0x10] sm:$0xff] %v226
                  %v228 = vld [vmem:[%s220 + $0x60] sm:$0xff]
                  %229 = vst [vmem:[%s221 + $0x18] sm:$0xff] %v228
                $region52: #{tpu_custom_call.1} parent=46 // loop_footer
                  %s219 = sadd.s32 1, %s215
                $region53: #{tpu_custom_call.1} parent=46 // loop_footer_branch
                  %214 = sbr.rel target = $region49
                $region54: #{tpu_custom_call.1} parent=46 // loop_exit
                  _
              $region47: #{tpu_custom_call.1} parent=31 // pred_fallthru
                _
              // Predicated region
              $region55: #{tpu_custom_call.1} parent=31 // pred_check
                _
              $region56: #{tpu_custom_call.1} parent=31 // pred_check_branch
                %231 = sbr.rel target = $region58
              $region57: #{tpu_custom_call.1} parent=31 // pred_region
                _
              $region58: #{tpu_custom_call.1} parent=31 // pred_fallthru
                _
            $region32: #{tpu_custom_call.1} parent=27 // pred_fallthru
              _
            // Predicated region
            $region33: #{tpu_custom_call.1} parent=27 // pred_check
              _
            $region34: #{tpu_custom_call.1} parent=27 // pred_check_branch
              %194 = sbr.rel target = $region36
            $region35: #{tpu_custom_call.1} parent=27 // pred_region
              loop: start=0, step=1, limit=1
              $region37: #{tpu_custom_call.1} parent=35 // loop_pre_header
                _
              $region38: #{tpu_custom_call.1} parent=35 // loop_header
                %s197 = sphi 0, %s201
                %p198 = scmp.ge.s32.totalorder %s197, 1
                %s202 = sphi %s188, %s188
                %s203 = sphi %s184, %s184
              $region39: #{tpu_custom_call.1} parent=35 // loop_header_branch
                %200 = sbr.rel (%p198) target = $region43
              $region40: #{tpu_custom_call.1} parent=35 // loop_body
                %v204 = vld [vmem:[%s202] sm:$0xff]
                %205 = vst [vmem:[%s203] sm:$0xff] %v204
                %v206 = vld [vmem:[%s202 + $0x20] sm:$0xff]
                %207 = vst [vmem:[%s203 + $0x8] sm:$0xff] %v206
                %v208 = vld [vmem:[%s202 + $0x40] sm:$0xff]
                %209 = vst [vmem:[%s203 + $0x10] sm:$0xff] %v208
                %v210 = vld [vmem:[%s202 + $0x60] sm:$0xff]
                %211 = vst [vmem:[%s203 + $0x18] sm:$0xff] %v210
              $region41: #{tpu_custom_call.1} parent=35 // loop_footer
                %s201 = sadd.s32 1, %s197
              $region42: #{tpu_custom_call.1} parent=35 // loop_footer_branch
                %196 = sbr.rel target = $region38
              $region43: #{tpu_custom_call.1} parent=35 // loop_exit
                _
            $region36: #{tpu_custom_call.1} parent=27 // pred_fallthru
              _
          $region28: #{tpu_custom_call.1} parent=23 // pred_fallthru
            _
          %232 = vnop
        $region24: #{tpu_custom_call.1} parent=19 // pred_fallthru
          _
        // Predicated region
        $region59: #{tpu_custom_call.1} parent=19 // pred_check
          %p233 = pneg %p94
        $region60: #{tpu_custom_call.1} parent=19 // pred_check_branch
          %235 = sbr.rel (%p233) target = $region62
        $region61: #{tpu_custom_call.1} parent=19 // pred_region
          %s236 = sand.u32 %s84, 1
          %s237 = sand.u32 %s84, 1
          %s238 = smul.addr %s237, 32
          %s239 = scalar_lea.vmem [#allocation4], %s238
          %s240 = smul.addr %s18, 16
          %s241 = sadd.s32 %s19, %s240
          %s242 = smul.addr %s241, 8
          %s243 = scalar_lea.vmem %s2, %s242
          // Predicated region
          $region63: #{tpu_custom_call.1} parent=61 // pred_check
            _
          $region64: #{tpu_custom_call.1} parent=61 // pred_check_branch
            %245 = sbr.rel (0) target = $region66
          $region65: #{tpu_custom_call.1} parent=61 // pred_region
            // Predicated region
            $region67: #{tpu_custom_call.1} parent=65 // pred_check
              _
            $region68: #{tpu_custom_call.1} parent=65 // pred_check_branch
              %247 = sbr.rel (0) target = $region70
            $region69: #{tpu_custom_call.1} parent=65 // pred_region
              // Predicated region
              $region82: #{tpu_custom_call.1} parent=69 // pred_check
                _
              $region83: #{tpu_custom_call.1} parent=69 // pred_check_branch
                %268 = sbr.rel (0) target = $region85
              $region84: #{tpu_custom_call.1} parent=69 // pred_region
                loop: start=0, step=1, limit=1
                $region86: #{tpu_custom_call.1} parent=84 // loop_pre_header
                  _
                $region87: #{tpu_custom_call.1} parent=84 // loop_header
                  %s270 = sphi 0, %s274
                  %p271 = scmp.ge.s32.totalorder %s270, 1
                  %s275 = sphi %s243, %s243
                  %s276 = sphi %s239, %s239
                $region88: #{tpu_custom_call.1} parent=84 // loop_header_branch
                  %273 = sbr.rel (%p271) target = $region92
                $region89: #{tpu_custom_call.1} parent=84 // loop_body
                  %v277 = vld [vmem:[%s275] sm:$0xff]
                  %278 = vst [vmem:[%s276] sm:$0xff] %v277
                  %v279 = vld [vmem:[%s275 + $0x20] sm:$0xff]
                  %280 = vst [vmem:[%s276 + $0x8] sm:$0xff] %v279
                  %v281 = vld [vmem:[%s275 + $0x40] sm:$0xff]
                  %282 = vst [vmem:[%s276 + $0x10] sm:$0xff] %v281
                  %v283 = vld [vmem:[%s275 + $0x60] sm:$0xff]
                  %284 = vst [vmem:[%s276 + $0x18] sm:$0xff] %v283
                $region90: #{tpu_custom_call.1} parent=84 // loop_footer
                  %s274 = sadd.s32 1, %s270
                $region91: #{tpu_custom_call.1} parent=84 // loop_footer_branch
                  %269 = sbr.rel target = $region87
                $region92: #{tpu_custom_call.1} parent=84 // loop_exit
                  _
              $region85: #{tpu_custom_call.1} parent=69 // pred_fallthru
                _
              // Predicated region
              $region93: #{tpu_custom_call.1} parent=69 // pred_check
                _
              $region94: #{tpu_custom_call.1} parent=69 // pred_check_branch
                %286 = sbr.rel target = $region96
              $region95: #{tpu_custom_call.1} parent=69 // pred_region
                _
              $region96: #{tpu_custom_call.1} parent=69 // pred_fallthru
                _
            $region70: #{tpu_custom_call.1} parent=65 // pred_fallthru
              _
            // Predicated region
            $region71: #{tpu_custom_call.1} parent=65 // pred_check
              _
            $region72: #{tpu_custom_call.1} parent=65 // pred_check_branch
              %249 = sbr.rel target = $region74
            $region73: #{tpu_custom_call.1} parent=65 // pred_region
              loop: start=0, step=1, limit=1
              $region75: #{tpu_custom_call.1} parent=73 // loop_pre_header
                _
              $region76: #{tpu_custom_call.1} parent=73 // loop_header
                %s252 = sphi 0, %s256
                %p253 = scmp.ge.s32.totalorder %s252, 1
                %s257 = sphi %s243, %s243
                %s258 = sphi %s239, %s239
              $region77: #{tpu_custom_call.1} parent=73 // loop_header_branch
                %255 = sbr.rel (%p253) target = $region81
              $region78: #{tpu_custom_call.1} parent=73 // loop_body
                %v259 = vld [vmem:[%s257] sm:$0xff]
                %260 = vst [vmem:[%s258] sm:$0xff] %v259
                %v261 = vld [vmem:[%s257 + $0x20] sm:$0xff]
                %262 = vst [vmem:[%s258 + $0x8] sm:$0xff] %v261
                %v263 = vld [vmem:[%s257 + $0x40] sm:$0xff]
                %264 = vst [vmem:[%s258 + $0x10] sm:$0xff] %v263
                %v265 = vld [vmem:[%s257 + $0x60] sm:$0xff]
                %266 = vst [vmem:[%s258 + $0x18] sm:$0xff] %v265
              $region79: #{tpu_custom_call.1} parent=73 // loop_footer
                %s256 = sadd.s32 1, %s252
              $region80: #{tpu_custom_call.1} parent=73 // loop_footer_branch
                %251 = sbr.rel target = $region76
              $region81: #{tpu_custom_call.1} parent=73 // loop_exit
                _
            $region74: #{tpu_custom_call.1} parent=65 // pred_fallthru
              _
          $region66: #{tpu_custom_call.1} parent=61 // pred_fallthru
            _
          %287 = vnop
        $region62: #{tpu_custom_call.1} parent=19 // pred_fallthru
          _
        // Predicated region
        $region97: #{tpu_custom_call.1} parent=19 // pred_check
          %p288 = pneg %p122
        $region98: #{tpu_custom_call.1} parent=19 // pred_check_branch
          %290 = sbr.rel (%p288) target = $region100
        $region99: #{tpu_custom_call.1} parent=19 // pred_region
          %p291 = scmp.lt.s32.totalorder %s18, 1
          %s292 = scalar_select %p291, %s18, 1
          %p293 = scmp.lt.s32.totalorder %s19, 3
          %s294 = scalar_select %p293, %s19, 3
          %s295 = smul.addr %s292, 4
          %s296 = sadd.s32 %s294, %s295
          %s297 = scalar_lea.vmem %s3, %s296
        $region100: #{tpu_custom_call.1} parent=19 // pred_fallthru
          _
      $region20: #{tpu_custom_call.1} parent=5 // pred_fallthru
        _
      %p298 = scmp.le.s32.totalorder 1, %s11
      %p299 = scmp.lt.s32.totalorder %s11, 9
      %p300 = pnand %p298, %p299
      %p301 = pneg %p300
      // Predicated region
      $region101: #{tpu_custom_call.1} parent=5 // pred_check
        _
      $region102: #{tpu_custom_call.1} parent=5 // pred_check_branch
        %303 = sbr.rel (%p300) target = $region104
      $region103: #{tpu_custom_call.1} parent=5 // pred_region
        %s304 = ssub.s32 %s11, 1
        %s305 = sand.u32 %s59, 1
        %s306 = sand.u32 %s59, 1
        %s307 = smul.addr %s306, 32
        %s308 = scalar_lea.vmem [#allocation3], %s307
        // Predicated region
        $region105: #{tpu_custom_call.1} parent=103 // pred_check
          %p309 = pneg %p72
        $region106: #{tpu_custom_call.1} parent=103 // pred_check_branch
          %311 = sbr.rel (%p309) target = $region108
        $region107: #{tpu_custom_call.1} parent=103 // pred_region
          _
        $region108: #{tpu_custom_call.1} parent=103 // pred_fallthru
          _
        %s312 = sand.u32 %s87, 1
        %s313 = sand.u32 %s87, 1
        %s314 = smul.addr %s313, 32
        %s315 = scalar_lea.vmem [#allocation4], %s314
        // Predicated region
        $region109: #{tpu_custom_call.1} parent=103 // pred_check
          %p316 = pneg %p100
        $region110: #{tpu_custom_call.1} parent=103 // pred_check_branch
          %318 = sbr.rel (%p316) target = $region112
        $region111: #{tpu_custom_call.1} parent=103 // pred_region
          _
        $region112: #{tpu_custom_call.1} parent=103 // pred_fallthru
          _
        %p319 = pneg %p44
        %p320 = pneg %p41
        %s321 = sand.u32 %s59, 1
        %s322 = sand.u32 %s59, 1
        %s323 = smul.addr %s322, 32
        %s324 = scalar_lea.vmem [#allocation3], %s323
        %p325 = pneg %p72
        %p326 = pneg %p69
        %s327 = sand.u32 %s87, 1
        %s328 = sand.u32 %s87, 1
        %s329 = smul.addr %s328, 32
        %s330 = scalar_lea.vmem [#allocation4], %s329
        %p331 = pneg %p100
        %p332 = pneg %p97
        %p333 = scmp.lt.s32.totalorder %s20, 1
        %s334 = scalar_select %p333, %s20, 1
        %p335 = scmp.lt.s32.totalorder %s21, 3
        %s336 = scalar_select %p335, %s21, 3
        %s337 = smul.addr %s334, 4
        %s338 = sadd.s32 %s336, %s337
        %s339 = scalar_lea.vmem %s3, %s338
        %p340 = pneg %p128
        %p341 = pneg %p125
        %p342 = pneg %p156
        %p343 = pneg %p153
        %s344 = sand.u32 %s143, 1
        %s345 = sand.u32 %s143, 1
        %s346 = smul.addr %s345, 32
        %s347 = scalar_lea.vmem [#allocation5], %s346
        %p348 = scmp.lt.s32.totalorder %s20, 1
        %s349 = scalar_select %p348, %s20, 1
        %p350 = scmp.lt.s32.totalorder %s21, 3
        %s351 = scalar_select %p350, %s21, 3
        %s352 = smul.addr %s349, 4
        %s353 = sadd.s32 %s351, %s352
        %s354 = scalar_lea.vmem %s3, %s353
        %s355 = sld [smem:[#allocation2]]
        %v356 = vld [vmem:[%s308] sm:$0xff]
        %v357 = vld [vmem:[%s308 + $0x8] sm:$0xff]
        %v358 = vld [vmem:[%s308 + $0x10] sm:$0xff]
        %v359 = vld [vmem:[%s308 + $0x18] sm:$0xf]
        %v360 = vld [vmem:[%s315] sm:$0xff]
        %v361 = vld [vmem:[%s315 + $0x8] sm:$0xff]
        %v362 = vld [vmem:[%s315 + $0x10] sm:$0xff]
        %v363 = vld [vmem:[%s315 + $0x18] sm:$0xf]
        %v364 = vld [vmem:[%s354] sm:$0x1]
        %v365 = vmul.f32 %v356, %v360
        %v366 = vmul.f32 %v357, %v361
        %v367 = vmul.f32 %v358, %v362
        %v368 = vmul.f32 %v359, %v363
        %v369 = vadd.f32 %v365, %v366
        %v370 = vadd.f32 %v369, %v367
        %vm371 = vcmask 1043456
        %v372 = vsel %vm371, %v368, 0.0
        %v373 = vadd.f32 %v370, %v372
        %v374 = vrot.slane %v373, 4
        %v375 = vadd.f32 %v373, %v374
        %v376 = vrot.slane %v375, 2
        %v377 = vadd.f32 %v375, %v376
        %v378 = vrot.slane %v377, 1
        %v379 = vadd.f32 %v377, %v378
        %v380 = vsub.f32 %v379, %v364
        %v381 = vstv %s355
        %v382 = vmul.f32 %v381, %v380
        %v383 = vlaneseq
        %v384 = vshrl.u32 %v383, 7
        %v385 = vsub.s32 0, %v384
        %v386 = vrot.slane %v382, %v385
        %v387 = vmul.f32 %v360, %v386
        %v388 = vmul.f32 %v361, %v386
        %v389 = vmul.f32 %v362, %v386
        %v390 = vmul.f32 %v363, %v386
        %v391 = vsub.f32 %v356, %v387
        %v392 = vsub.f32 %v357, %v388
        %v393 = vsub.f32 %v358, %v389
        %v394 = vsub.f32 %v359, %v390
        %395 = vst [vmem:[%s347] sm:$0xff] %v391
        %396 = vst [vmem:[%s347 + $0x8] sm:$0xff] %v392
        %397 = vst [vmem:[%s347 + $0x10] sm:$0xff] %v393
        %398 = vst [vmem:[%s347 + $0x18] sm:$0xf] %v394
        %s399 = sand.u32 %s143, 1
        %s400 = sand.u32 %s143, 1
        %s401 = smul.addr %s400, 32
        %s402 = scalar_lea.vmem [#allocation5], %s401
        // Predicated region
        $region113: #{tpu_custom_call.1} parent=103 // pred_check
          %p403 = pneg %p153
        $region114: #{tpu_custom_call.1} parent=103 // pred_check_branch
          %405 = sbr.rel (%p403) target = $region116
        $region115: #{tpu_custom_call.1} parent=103 // pred_region
          %s406 = smul.addr %s20, 16
          %s407 = sadd.s32 %s21, %s406
          %s408 = smul.addr %s407, 8
          %s409 = scalar_lea.vmem %s4, %s408
          // Predicated region
          $region117: #{tpu_custom_call.1} parent=115 // pred_check
            _
          $region118: #{tpu_custom_call.1} parent=115 // pred_check_branch
            %411 = sbr.rel (0) target = $region120
          $region119: #{tpu_custom_call.1} parent=115 // pred_region
            // Predicated region
            $region121: #{tpu_custom_call.1} parent=119 // pred_check
              _
            $region122: #{tpu_custom_call.1} parent=119 // pred_check_branch
              %413 = sbr.rel (0) target = $region124
            $region123: #{tpu_custom_call.1} parent=119 // pred_region
              // Predicated region
              $region136: #{tpu_custom_call.1} parent=123 // pred_check
                _
              $region137: #{tpu_custom_call.1} parent=123 // pred_check_branch
                %434 = sbr.rel (0) target = $region139
              $region138: #{tpu_custom_call.1} parent=123 // pred_region
                loop: start=0, step=1, limit=1
                $region140: #{tpu_custom_call.1} parent=138 // loop_pre_header
                  _
                $region141: #{tpu_custom_call.1} parent=138 // loop_header
                  %s436 = sphi 0, %s440
                  %p437 = scmp.ge.s32.totalorder %s436, 1
                  %s441 = sphi %s402, %s402
                  %s442 = sphi %s409, %s409
                $region142: #{tpu_custom_call.1} parent=138 // loop_header_branch
                  %439 = sbr.rel (%p437) target = $region146
                $region143: #{tpu_custom_call.1} parent=138 // loop_body
                  %v443 = vld [vmem:[%s441] sm:$0xff]
                  %444 = vst [vmem:[%s442] sm:$0xff] %v443
                  %v445 = vld [vmem:[%s441 + $0x8] sm:$0xff]
                  %446 = vst [vmem:[%s442 + $0x20] sm:$0xff] %v445
                  %v447 = vld [vmem:[%s441 + $0x10] sm:$0xff]
                  %448 = vst [vmem:[%s442 + $0x40] sm:$0xff] %v447
                  %v449 = vld [vmem:[%s441 + $0x18] sm:$0xff]
                  %450 = vst [vmem:[%s442 + $0x60] sm:$0xff] %v449
                $region144: #{tpu_custom_call.1} parent=138 // loop_footer
                  %s440 = sadd.s32 1, %s436
                $region145: #{tpu_custom_call.1} parent=138 // loop_footer_branch
                  %435 = sbr.rel target = $region141
                $region146: #{tpu_custom_call.1} parent=138 // loop_exit
                  _
              $region139: #{tpu_custom_call.1} parent=123 // pred_fallthru
                _
              // Predicated region
              $region147: #{tpu_custom_call.1} parent=123 // pred_check
                _
              $region148: #{tpu_custom_call.1} parent=123 // pred_check_branch
                %452 = sbr.rel target = $region150
              $region149: #{tpu_custom_call.1} parent=123 // pred_region
                _
              $region150: #{tpu_custom_call.1} parent=123 // pred_fallthru
                _
            $region124: #{tpu_custom_call.1} parent=119 // pred_fallthru
              _
            // Predicated region
            $region125: #{tpu_custom_call.1} parent=119 // pred_check
              _
            $region126: #{tpu_custom_call.1} parent=119 // pred_check_branch
              %415 = sbr.rel target = $region128
            $region127: #{tpu_custom_call.1} parent=119 // pred_region
              loop: start=0, step=1, limit=1
              $region129: #{tpu_custom_call.1} parent=127 // loop_pre_header
                _
              $region130: #{tpu_custom_call.1} parent=127 // loop_header
                %s418 = sphi 0, %s422
                %p419 = scmp.ge.s32.totalorder %s418, 1
                %s423 = sphi %s402, %s402
                %s424 = sphi %s409, %s409
              $region131: #{tpu_custom_call.1} parent=127 // loop_header_branch
                %421 = sbr.rel (%p419) target = $region135
              $region132: #{tpu_custom_call.1} parent=127 // loop_body
                %v425 = vld [vmem:[%s423] sm:$0xff]
                %426 = vst [vmem:[%s424] sm:$0xff] %v425
                %v427 = vld [vmem:[%s423 + $0x8] sm:$0xff]
                %428 = vst [vmem:[%s424 + $0x20] sm:$0xff] %v427
                %v429 = vld [vmem:[%s423 + $0x10] sm:$0xff]
                %430 = vst [vmem:[%s424 + $0x40] sm:$0xff] %v429
                %v431 = vld [vmem:[%s423 + $0x18] sm:$0xff]
                %432 = vst [vmem:[%s424 + $0x60] sm:$0xff] %v431
              $region133: #{tpu_custom_call.1} parent=127 // loop_footer
                %s422 = sadd.s32 1, %s418
              $region134: #{tpu_custom_call.1} parent=127 // loop_footer_branch
                %417 = sbr.rel target = $region130
              $region135: #{tpu_custom_call.1} parent=127 // loop_exit
                _
            $region128: #{tpu_custom_call.1} parent=119 // pred_fallthru
              _
          $region120: #{tpu_custom_call.1} parent=115 // pred_fallthru
            _
          %453 = vnop
        $region116: #{tpu_custom_call.1} parent=103 // pred_fallthru
          _
      $region104: #{tpu_custom_call.1} parent=5 // pred_fallthru
        _
      %p454 = scmp.le.s32.totalorder 2, %s11
      // Predicated region
      $region151: #{tpu_custom_call.1} parent=5 // pred_check
        %p455 = pneg %p454
      $region152: #{tpu_custom_call.1} parent=5 // pred_check_branch
        %457 = sbr.rel (%p455) target = $region154
      $region153: #{tpu_custom_call.1} parent=5 // pred_region
        %s458 = ssub.s32 %s11, 2
        // Predicated region
        $region155: #{tpu_custom_call.1} parent=153 // pred_check
          %p459 = pneg %p159
        $region156: #{tpu_custom_call.1} parent=153 // pred_check_branch
          %461 = sbr.rel (%p459) target = $region158
        $region157: #{tpu_custom_call.1} parent=153 // pred_region
          %s462 = sand.u32 %s144, 1
          %s463 = sand.u32 %s144, 1
          %s464 = smul.addr %s463, 32
          %s465 = scalar_lea.vmem [#allocation5], %s464
        $region158: #{tpu_custom_call.1} parent=153 // pred_fallthru
          _
      $region154: #{tpu_custom_call.1} parent=5 // pred_fallthru
        _
    $region6: #{tpu_custom_call.1} parent=1 // loop_footer
      %s15 = sadd.s32 1, %s11
    $region7: #{tpu_custom_call.1} parent=1 // loop_footer_branch
      %10 = sbr.rel target = $region3
    $region8: #{tpu_custom_call.1} parent=1 // loop_exit
      _

</llo_original>
